<compile_context>
chip_gen: v7x
topology: tpu7x:2x2x1
jax: 0.10.0
libtpu: 0.0.40
codegen_flags: <defaults>
</compile_context>

<pallas_src>
import functools

import jax
import jax.numpy as jnp
from jax import lax
from jax.experimental import pallas as pl
from jax.experimental.pallas import tpu as pltpu


_LANE_CANDIDATES = (4096, 2048, 1024, 512, 256, 128)
_FALLBACK_LANES = 1024          # ragged-size fallback slab width
_VMEM_LIMIT_BYTES = 48 << 20    # < physical VMEM on v5e/v6e (128 MiB) and v7x (64 MiB)


def _phish_kernel(x_ref, o_ref, *, use_tanh_gelu: bool):
    x = x_ref[...].astype(jnp.float32)
    if use_tanh_gelu:
        # tanh-approx GELU: cheap on the VPU, tanh goes to the EUP slot.
        c = jnp.float32(0.7978845608028654)  # sqrt(2/pi)
        inner = c * (x + jnp.float32(0.044715) * x * x * x)
        gelu = 0.5 * x * (1.0 + jnp.tanh(inner))
    else:
        # Exact GELU (PyTorch F.gelu default): 0.5 * x * (1 + erf(x / sqrt(2)))
        gelu = 0.5 * x * (1.0 + lax.erf(x * jnp.float32(0.7071067811865476)))
    o_ref[...] = (x * jnp.tanh(gelu)).astype(o_ref.dtype)


def _device_tuning():
    """Per-generation (target_block_bytes, ensure_two_grid_steps)."""
    try:
        kind = jax.devices()[0].device_kind.lower()
    except Exception:
        return 4 << 20, True
    if "v5" in kind:   # v5e: 16 MiB scoped-VMEM default -> keep blocks modest
        return 3 << 20, False
    if "v6" in kind:   # v6e: ~1.4 TB/s HBM, 32 MiB scoped default
        return 6 << 20, False
    # v7x / unknown: ~3.2 TB/s HBM, 2 TensorCores -> big blocks, >=2 grid steps
    return 8 << 20, True


def phish(x: jax.Array, *, use_tanh_gelu: bool = False) -> jax.Array:
    """Elementwise Phish activation, any shape / float dtype.

    Math is done in float32 (float64 inputs are downcast for the computation).
    """
    orig_shape = x.shape
    orig_dtype = x.dtype
    n = x.size
    if n == 0:
        return x

    itemsize = jnp.dtype(orig_dtype).itemsize
    flat = x.reshape(-1)

    # Widest lane-dense width (multiple of 128) that divides n exactly ->
    # no padding / slicing (extra HBM passes) on the common path.
    lanes = None
    for cand in _LANE_CANDIDATES:
        if n % cand == 0:
            lanes = cand
            break

    padded_n = n
    if lanes is None:
        # Ragged size (n % 128 != 0): zero-pad input, slice output back.
        # Phish(0) == 0 so padding is numerically safe.
        # TODO(synk): write the ragged tail via a masked 1-D output block to
        # drop the pad/slice HBM passes once 1-D block layouts are vetted.
        lanes = _FALLBACK_LANES
        padded_n = ((n + lanes - 1) // lanes) * lanes
        flat = jnp.pad(flat, (0, padded_n - n))

    rows = padded_n // lanes
    x2d = flat.reshape(rows, lanes)

    target_bytes, want_two_steps = _device_tuning()

    # Dtype-aware block sizing: constant bytes per block, rows a multiple of 8.
    block_rows = max(1, target_bytes // (lanes * itemsize))
    block_rows = max(8, (block_rows // 8) * 8)
    block_rows = min(block_rows, rows)

    if want_two_steps and rows > 8 and (rows + block_rows - 1) // block_rows < 2:
        # Split into >= 2 grid steps so both v7x TensorCores get work.
        block_rows = max(8, (((rows + 1) // 2 + 7) // 8) * 8)
        block_rows = min(block_rows, rows)

    if 8 <= block_rows < rows and rows % block_rows != 0:
        # Snap to a divisor of `rows` when cheap -> no masked partial stores.
        for cand_rows in range(block_rows, max(8, block_rows // 2) - 1, -8):
            if rows % cand_rows == 0:
                block_rows = cand_rows
                break

    grid = ((rows + block_rows - 1) // block_rows,)

    flops_per_elem = 12 if use_tanh_gelu else 25  # erf polynomial ~15-20 VPU ops
    cost = pl.CostEstimate(
        flops=flops_per_elem * padded_n,
        transcendentals=2 * padded_n,              # (erf|tanh) + tanh per element
        bytes_accessed=2 * padded_n * itemsize,    # one read + one write
    )

    kernel = functools.partial(_phish_kernel, use_tanh_gelu=use_tanh_gelu)

    out2d = pl.pallas_call(
        kernel,
        out_shape=jax.ShapeDtypeStruct((rows, lanes), orig_dtype),
        grid=grid,
        in_specs=[pl.BlockSpec((block_rows, lanes), lambda i: (i, 0))],
        out_specs=pl.BlockSpec((block_rows, lanes), lambda i: (i, 0)),
        compiler_params=pltpu.CompilerParams(
            dimension_semantics=("parallel",),
            vmem_limit_bytes=_VMEM_LIMIT_BYTES,
        ),
        cost_estimate=cost,
    )(x2d)

    if padded_n != n:
        return out2d.reshape(-1)[:n].reshape(orig_shape)
    return out2d.reshape(orig_shape)


def _phish_ref(x):
    xf = x.astype(jnp.float32)
    g = jax.nn.gelu(xf, approximate=False)
    return (xf * jnp.tanh(g)).astype(x.dtype)


if __name__ == "__main__":
    key = jax.random.PRNGKey(0)
    x = jax.random.normal(key, (2, 4, 16, 16), dtype=jnp.float32)  # NCHW

    out = phish(x)
    jax.block_until_ready(out)

    ref = _phish_ref(x)
    assert out.shape == x.shape and out.dtype == x.dtype
    assert jnp.allclose(out, ref, atol=1e-5, rtol=1e-5), "mismatch vs reference"

    # Ragged size -> exercises the pad/slice fallback path.
    x2 = jax.random.normal(jax.random.PRNGKey(1), (3, 5, 7), dtype=jnp.float32)
    out2 = phish(x2)
    jax.block_until_ready(out2)
    assert jnp.allclose(out2, _phish_ref(x2), atol=1e-5, rtol=1e-5)

    # bf16 path -> exercises dtype-aware (byte-based) block sizing.
    x3 = jax.random.normal(jax.random.PRNGKey(2), (8, 32, 128), dtype=jnp.bfloat16)
    out3 = phish(x3)
    jax.block_until_ready(out3)
    assert jnp.allclose(out3.astype(jnp.float32),
                        _phish_ref(x3).astype(jnp.float32), atol=2e-2, rtol=2e-2)

    print("KERNEL_OK")
</pallas_src>

<mosaic_0001>
module attributes {stable_mosaic.version = 11 : i64} {
  func.func @_phish_kernel(%arg0: i32, %arg1: memref<1x2048xf32, #tpu.memory_space<vmem>>, %arg2: memref<1x2048xf32, #tpu.memory_space<vmem>>) attributes {dimension_semantics = [#tpu.dimension_semantics<parallel>], iteration_bounds = array<i64: 1>, scalar_prefetch = 0 : i64, scratch_operands = 0 : i64, tpu.core_type = #tpu.core_type<tc>, window_params = [{transform_indices = @transform_0, window_bounds = array<i64: 1, 2048>}, {transform_indices = @transform_1, window_bounds = array<i64: 1, 2048>}]} {
    %c0 = arith.constant 0 : index
    %c0_0 = arith.constant 0 : index
    %0 = vector.load %arg1[%c0, %c0_0] : memref<1x2048xf32, #tpu.memory_space<vmem>>, vector<1x2048xf32>
    %cst = arith.constant 5.000000e-01 : f32
    %1 = vector.broadcast %cst : f32 to vector<1x2048xf32>
    %2 = arith.mulf %1, %0 : vector<1x2048xf32>
    %cst_1 = arith.constant 0.707106769 : f32
    %3 = vector.broadcast %cst_1 : f32 to vector<1x2048xf32>
    %4 = arith.mulf %0, %3 : vector<1x2048xf32>
    %5 = math.erf %4 : vector<1x2048xf32>
    %cst_2 = arith.constant 1.000000e+00 : f32
    %6 = vector.broadcast %cst_2 : f32 to vector<1x2048xf32>
    %7 = arith.addf %6, %5 : vector<1x2048xf32>
    %8 = arith.mulf %2, %7 : vector<1x2048xf32>
    %9 = math.tanh %8 : vector<1x2048xf32>
    %10 = arith.mulf %0, %9 : vector<1x2048xf32>
    %c0_3 = arith.constant 0 : index
    %c0_4 = arith.constant 0 : index
    %11 = vector.load %arg2[%c0_3, %c0_4] : memref<1x2048xf32, #tpu.memory_space<vmem>>, vector<1x2048xf32>
    tpu.vector_store %arg2[%c0_3, %c0_4], %10 {strides = array<i32>} : memref<1x2048xf32, #tpu.memory_space<vmem>>, vector<1x2048xf32>,
    return
  }
  func.func @transform_0(%arg0: i32) -> (i32, i32) {
    %c0_i32 = arith.constant 0 : i32
    %c0_i32_0 = arith.constant 0 : i32
    return %arg0, %c0_i32 : i32, i32
  }
  func.func @transform_1(%arg0: i32) -> (i32, i32) {
    %c0_i32 = arith.constant 0 : i32
    %c0_i32_0 = arith.constant 0 : i32
    return %arg0, %c0_i32 : i32, i32
  }
}

</mosaic_0001>

<llo_original>
// kernel: tpu_custom_call.1
$region0: #{tpu_custom_call.1}
  #allocation0 [shape = 'u32[]', space=smem, size = 0x4, offset = 0x4, fixed_abs, tag = 'smem constant byte address 0x4 - core index']
  #allocation1 [shape = 'u32[144,128]{1,0:T(1,128)}', space=vmem, size = 0x12000, scoped, tag = 'internal scratch']
  %s0 = inlined_call_operand.hbm [shape: f32[1,2048], index: 0, kind: input, shape index: {}]
  %s1 = inlined_call_operand.hbm [shape: f32[1,2048], index: 1, kind: output, shape index: {}]
  %s2 = sld [smem:[#allocation0]]
  $region18: #{tpu_custom_call.1} parent=0
    _
  %s4 = ssub.s32 1, %s2
  %s5 = scalar_select 0, %s4, %s2
  $region1: #{tpu_custom_call.1} parent=0
    #allocation2 [shape = 'u8[8192]{0}', space=vmem, size = 0x2000, scoped, tag = 'input window, operand 0, single buffered']
    #allocation3 [shape = 's32[1]{0}', space=sflag, size = 0x4, scoped, tag = 'scoped memory for tpu_custom_call.1']
    #allocation4 [shape = 's32[1]{0}', space=sflag, size = 0x4, scoped, tag = 'scoped memory for tpu_custom_call.1']
    #allocation5 [shape = 'u8[8192]{0}', space=vmem, size = 0x2000, scoped, tag = 'output window, operand 0, single buffered']
    %6 = vsyncpa [#allocation3], 0
    %7 = vsyncpa [#allocation4], 0
    // Predicated region
    $region2: #{tpu_custom_call.1} parent=1 // pred_check
      _
    $region3: #{tpu_custom_call.1} parent=1 // pred_check_branch
      %9 = sbr.rel (0) target = $region5
    $region4: #{tpu_custom_call.1} parent=1 // pred_region
      %s11 = ssub.s32 256, 256
      %12 = vsyncadd [#allocation3], %s11
      %s14 = sshll.u32 [#allocation2], 4
      %s15 = int_to_ptr.vmem [resolvable:$true] %s14
      %17 = dma.hbm_to_vmem [thread:$0]  %s0, 256, %s15, [#allocation3]
    $region5: #{tpu_custom_call.1} parent=1 // pred_fallthru
      _
    // Predicated region
    $region6: #{tpu_custom_call.1} parent=1 // pred_check
      _
    $region7: #{tpu_custom_call.1} parent=1 // pred_check_branch
      %19 = sbr.rel (0) target = $region9
    $region8: #{tpu_custom_call.1} parent=1 // pred_region
      %20 = dma.done [#allocation3], 256
    $region9: #{tpu_custom_call.1} parent=1 // pred_fallthru
      _
    %v21 = vld [vmem:[#allocation2] sm:$0xff]
    %v22 = vld [vmem:[#allocation2 + $0x8] sm:$0xff]
    %v23 = vmul.f32 %v21, 0.5
    %v24 = vmul.f32 %v22, 0.5
    %v25 = vmul.f32 %v21, 0.70710677
    %v26 = vmul.f32 %v22, 0.70710677
    %v27 = verf.f32.pop %v25
    %v28 = verf.f32.pop %v26
    %v29 = vadd.f32 %v27, 1.0
    %v30 = vadd.f32 %v28, 1.0
    %v31 = vmul.f32 %v23, %v29
    %v32 = vmul.f32 %v24, %v30
    %v33 = vtanh.pop %v31
    %v34 = vtanh.pop %v32
    %v35 = vmul.f32 %v21, %v33
    %v36 = vmul.f32 %v22, %v34
    %37 = vst [vmem:[#allocation5] sm:$0xff] %v35
    %38 = vst [vmem:[#allocation5 + $0x8] sm:$0xff] %v36
    // Predicated region
    $region10: #{tpu_custom_call.1} parent=1 // pred_check
      _
    $region11: #{tpu_custom_call.1} parent=1 // pred_check_branch
      %40 = sbr.rel (0) target = $region13
    $region12: #{tpu_custom_call.1} parent=1 // pred_region
      %s42 = ssub.s32 256, 256
      %43 = vsyncadd [#allocation4], %s42
      %s45 = sshll.u32 [#allocation5], 4
      %s46 = int_to_ptr.vmem [resolvable:$true] %s45
      %48 = dma.vmem_to_hbm [thread:$0]  %s46, 256, %s1, [#allocation4]
    $region13: #{tpu_custom_call.1} parent=1 // pred_fallthru
      _
    // Predicated region
    $region14: #{tpu_custom_call.1} parent=1 // pred_check
      _
    $region15: #{tpu_custom_call.1} parent=1 // pred_check_branch
      %50 = sbr.rel (0) target = $region17
    $region16: #{tpu_custom_call.1} parent=1 // pred_region
      %51 = dma.done [#allocation4], 256
    $region17: #{tpu_custom_call.1} parent=1 // pred_fallthru
      _
    %52 = vsyncpa [#allocation3], 1
    %53 = vsyncpa [#allocation4], 1

</llo_original>
